<compile_context>
chip_gen: v6e
topology: v6e:2x2x1
jax: 0.10.0
libtpu: 0.0.40
codegen_flags: <defaults>
</compile_context>

<pallas_src>
import math

import jax
import jax.numpy as jnp
from jax.experimental import pallas as pl
from jax.experimental.pallas import tpu as pltpu

D_MODEL = 32
NHEAD = 4
HEAD_DIM = D_MODEL // NHEAD
SEQ = 8
BATCH = 2
LN_EPS = 1e-5
NEG_INF = -1e30


def _self_attn_layer_kernel(x_ref, pos_ref, wblk_ref, wo_ref, aux_ref,
                            hmask_ref, bmask_ref, out_ref):
    """x_ref/pos_ref/out_ref: (L*N, E) flattened slabs.
    wblk_ref: (2E, 3E) block-diagonal QKV weight (pre-transposed).
    wo_ref:   (E, E)  = Wo^T.
    aux_ref:  (2, 3E) = [in_proj_bias ; out_bias|gamma|beta].
    hmask_ref:(H*L*N, E) head-block 0/1 mask. bmask_ref:(L*N, H*L*N) additive batch mask."""
    E = D_MODEL
    H = NHEAD
    Dh = HEAD_DIM
    scale = 1.0 / math.sqrt(Dh)

    x = x_ref[...].astype(jnp.float32)        # (16, 32)
    pos = pos_ref[...].astype(jnp.float32)    # (16, 32)
    wblk = wblk_ref[...]                      # (64, 96)
    wo = wo_ref[...]                          # (32, 32)
    bqkv = aux_ref[0:1, :]                    # (1, 96)
    bo = aux_ref[1:2, :E]                     # (1, 32)
    gamma = aux_ref[1:2, E:2 * E]             # (1, 32)
    beta = aux_ref[1:2, 2 * E:]               # (1, 32)
    hmask = hmask_ref[...]                    # (64, 32)
    bmask = bmask_ref[...]                    # (16, 64)

    # Fused Q|K|V projection for both batch elements: one MXU pass.
    inp = jnp.concatenate([x + pos, x], axis=1)                              # (16, 64)
    qkv = jnp.dot(inp, wblk, preferred_element_type=jnp.float32) + bqkv      # (16, 96)
    q = qkv[:, :E]
    k = qkv[:, E:2 * E]
    v = qkv[:, 2 * E:]

    # Stacked-head scores: one matmul for all (batch, head) pairs.
    # K_rows[h*LN + r', :] = k[r', :] masked to head h's Dh columns, so
    # S[r, h*LN + r'] = scale * <q_h[r], k_h[r']>  (A @ B^T form, no explicit transpose).
    k_rows = jnp.concatenate([k] * H, axis=0) * hmask                        # (64, 32)
    s = jax.lax.dot_general(q * scale, k_rows, (((1,), (1,)), ((), ())),
                            preferred_element_type=jnp.float32)              # (16, 64)
    s = s + bmask                                    # block cross-batch attention
    # Global row max is a valid per-head stabilizer (constant cancels in the softmax).
    s = s - jnp.max(s, axis=-1, keepdims=True)
    p = jnp.exp(s)                                   # masked entries -> exp(-1e30) == 0

    # PV and per-head softmax denominators in a single matmul; normalize after PV.
    v_rows = jnp.concatenate([v] * H, axis=0) * hmask                        # (64, 32)
    pv_rhs = jnp.concatenate([v_rows, hmask], axis=1)                        # (64, 64)
    od = jnp.dot(p, pv_rhs, preferred_element_type=jnp.float32)              # (16, 64)
    attn = od[:, :E] * pl.reciprocal(od[:, E:], approx=False)                # (16, 32)

    # Out-projection + residual + LayerNorm on the whole slab, one block store.
    y = jnp.dot(attn, wo, preferred_element_type=jnp.float32) + bo + x       # (16, 32)
    mean = jnp.mean(y, axis=-1, keepdims=True)
    yc = y - mean
    var = jnp.mean(yc * yc, axis=-1, keepdims=True)
    out_ref[...] = (yc * jax.lax.rsqrt(var + LN_EPS) * gamma + beta).astype(out_ref.dtype)


def pack_params(params, L=SEQ, N=BATCH):
    """One-time (cacheable) parameter packing: block-diagonal QKV weight, transposed
    out-proj weight, packed bias/LN slab, and the constant attention masks."""
    E = D_MODEL
    H = NHEAD
    Dh = HEAD_DIM
    LN = L * N

    W = params["in_proj_weight"]                      # (3E, E) = [Wq; Wk; Wv]
    wq_t, wk_t, wv_t = W[:E].T, W[E:2 * E].T, W[2 * E:].T
    zeros = jnp.zeros((E, E), jnp.float32)
    wblk = jnp.concatenate(
        [jnp.concatenate([wq_t, wk_t, zeros], axis=1),          # rows hit by (tgt + pos)
         jnp.concatenate([zeros, zeros, wv_t], axis=1)],        # rows hit by tgt
        axis=0).astype(jnp.float32)                             # (2E, 3E)

    wo_t = jnp.transpose(params["out_proj_weight"]).astype(jnp.float32)      # (E, E)

    aux = jnp.stack(
        [params["in_proj_bias"],
         jnp.concatenate([params["out_proj_bias"], params["ln_weight"],
                          params["ln_bias"]], axis=0)],
        axis=0).astype(jnp.float32)                                          # (2, 3E)

    # Head-block mask: row h*LN + r' keeps only head h's Dh columns.
    a = jnp.arange(H * LN)[:, None]
    b = jnp.arange(E)[None, :]
    hmask = ((a // LN) == (b // Dh)).astype(jnp.float32)                     # (H*LN, E)

    # Additive batch mask: query row r (batch r % N) may only attend keys r' with the
    # same batch; columns are c = h*LN + r'.
    r = jnp.arange(LN)[:, None]
    c = jnp.arange(H * LN)[None, :]
    bmask = jnp.where((r % N) == ((c % LN) % N), 0.0, NEG_INF).astype(jnp.float32)

    return {"wblk": wblk, "wo_t": wo_t, "aux": aux, "hmask": hmask, "bmask": bmask}


@jax.jit
def self_attention_layer(tgt, query_pos, packed):
    """tgt, query_pos: (L, N, E) float32 (PyTorch seq-first layout). Returns (L, N, E)."""
    L, N, E = tgt.shape
    tgt2 = tgt.reshape(L * N, E)            # free contiguous view, not a transpose
    pos2 = query_pos.reshape(L * N, E)

    vmem = pl.BlockSpec(memory_space=pltpu.MemorySpace.VMEM)
    out = pl.pallas_call(
        _self_attn_layer_kernel,
        out_shape=jax.ShapeDtypeStruct((L * N, E), jnp.float32),
        in_specs=[vmem] * 7,
        out_specs=vmem,
    )(tgt2, pos2, packed["wblk"], packed["wo_t"], packed["aux"],
      packed["hmask"], packed["bmask"])
    return out.reshape(L, N, E)


def _xavier_uniform(key, shape):
    fan_out, fan_in = shape
    bound = math.sqrt(6.0 / (fan_in + fan_out))
    return jax.random.uniform(key, shape, jnp.float32, -bound, bound)


def init_params(key, d_model):
    k1, k2 = jax.random.split(key)
    return {
        # nn.MultiheadAttention: packed in_proj (xavier via _reset_parameters), zero biases
        "in_proj_weight": _xavier_uniform(k1, (3 * d_model, d_model)),
        "in_proj_bias": jnp.zeros((3 * d_model,), jnp.float32),
        "out_proj_weight": _xavier_uniform(k2, (d_model, d_model)),
        "out_proj_bias": jnp.zeros((d_model,), jnp.float32),
        # nn.LayerNorm defaults
        "ln_weight": jnp.ones((d_model,), jnp.float32),
        "ln_bias": jnp.zeros((d_model,), jnp.float32),
    }


def reference_forward(tgt, query_pos, params):
    """Pure-JAX reference mirroring PyTorch forward_post."""
    E = tgt.shape[-1]
    qk_in = tgt + query_pos                               # (L, N, E)
    w = params["in_proj_weight"]
    b = params["in_proj_bias"]
    q = qk_in @ w[0:E].T + b[0:E]
    k = qk_in @ w[E:2 * E].T + b[E:2 * E]
    v = tgt @ w[2 * E:3 * E].T + b[2 * E:3 * E]

    def split_heads(x):   # (L, N, E) -> (N, H, L, Dh)
        L, N, _ = x.shape
        return jnp.transpose(x.reshape(L, N, NHEAD, HEAD_DIM), (1, 2, 0, 3))

    qh, kh, vh = split_heads(q), split_heads(k), split_heads(v)
    s = jnp.einsum("nhqd,nhkd->nhqk", qh, kh) / math.sqrt(HEAD_DIM)
    p = jax.nn.softmax(s, axis=-1)
    o = jnp.einsum("nhqk,nhkd->nhqd", p, vh)              # (N, H, L, Dh)
    L = tgt.shape[0]
    o = jnp.transpose(o, (2, 0, 1, 3)).reshape(L, -1, E)  # (L, N, E)
    o = o @ params["out_proj_weight"].T + params["out_proj_bias"]

    x = tgt + o
    mean = jnp.mean(x, axis=-1, keepdims=True)
    var = jnp.mean((x - mean) ** 2, axis=-1, keepdims=True)
    return (x - mean) * jax.lax.rsqrt(var + LN_EPS) * params["ln_weight"] + params["ln_bias"]


if __name__ == "__main__":
    key = jax.random.PRNGKey(0)
    k_p, k_t, k_q = jax.random.split(key, 3)

    params = init_params(k_p, D_MODEL)
    packed = pack_params(params)                          # computed once, reused per call
    tgt = jax.random.normal(k_t, (SEQ, BATCH, D_MODEL), jnp.float32)
    query_pos = jax.random.normal(k_q, (SEQ, BATCH, D_MODEL), jnp.float32)

    out = self_attention_layer(tgt, query_pos, packed)
    out = jax.block_until_ready(out)

    ref = reference_forward(tgt, query_pos, params)
    assert out.shape == (SEQ, BATCH, D_MODEL)
    assert jnp.allclose(out, ref, atol=1e-4, rtol=1e-4), "mismatch vs JAX reference"
    print("KERNEL_OK")
</pallas_src>

<mosaic_0001>
module attributes {stable_mosaic.version = 11 : i64} {
  func.func @_self_attn_layer_kernel(%arg0: memref<16x32xf32, #tpu.memory_space<vmem>>, %arg1: memref<16x32xf32, #tpu.memory_space<vmem>>, %arg2: memref<64x96xf32, #tpu.memory_space<vmem>>, %arg3: memref<32x32xf32, #tpu.memory_space<vmem>>, %arg4: memref<2x96xf32, #tpu.memory_space<vmem>>, %arg5: memref<64x32xf32, #tpu.memory_space<vmem>>, %arg6: memref<16x64xf32, #tpu.memory_space<vmem>>, %arg7: memref<16x32xf32, #tpu.memory_space<vmem>>) attributes {dimension_semantics = [], scalar_prefetch = 0 : i64, scratch_operands = 0 : i64, tpu.core_type = #tpu.core_type<tc>} {
    %c0 = arith.constant 0 : index
    %c0_0 = arith.constant 0 : index
    %0 = vector.load %arg0[%c0, %c0_0] : memref<16x32xf32, #tpu.memory_space<vmem>>, vector<16x32xf32>
    %c0_1 = arith.constant 0 : index
    %c0_2 = arith.constant 0 : index
    %1 = vector.load %arg1[%c0_1, %c0_2] : memref<16x32xf32, #tpu.memory_space<vmem>>, vector<16x32xf32>
    %c0_3 = arith.constant 0 : index
    %c0_4 = arith.constant 0 : index
    %2 = vector.load %arg2[%c0_3, %c0_4] : memref<64x96xf32, #tpu.memory_space<vmem>>, vector<64x96xf32>
    %c0_5 = arith.constant 0 : index
    %c0_6 = arith.constant 0 : index
    %3 = vector.load %arg3[%c0_5, %c0_6] : memref<32x32xf32, #tpu.memory_space<vmem>>, vector<32x32xf32>
    %c0_7 = arith.constant 0 : index
    %c0_8 = arith.constant 0 : index
    %4 = vector.load %arg4[%c0_7, %c0_8] : memref<2x96xf32, #tpu.memory_space<vmem>>, vector<1x96xf32>
    %c1 = arith.constant 1 : index
    %c0_9 = arith.constant 0 : index
    %5 = vector.load %arg4[%c1, %c0_9] : memref<2x96xf32, #tpu.memory_space<vmem>>, vector<1x32xf32>
    %c1_10 = arith.constant 1 : index
    %c32 = arith.constant 32 : index
    %6 = vector.load %arg4[%c1_10, %c32] : memref<2x96xf32, #tpu.memory_space<vmem>>, vector<1x32xf32>
    %c1_11 = arith.constant 1 : index
    %c64 = arith.constant 64 : index
    %7 = vector.load %arg4[%c1_11, %c64] : memref<2x96xf32, #tpu.memory_space<vmem>>, vector<1x32xf32>
    %c0_12 = arith.constant 0 : index
    %c0_13 = arith.constant 0 : index
    %8 = vector.load %arg5[%c0_12, %c0_13] : memref<64x32xf32, #tpu.memory_space<vmem>>, vector<64x32xf32>
    %c0_14 = arith.constant 0 : index
    %c0_15 = arith.constant 0 : index
    %9 = vector.load %arg6[%c0_14, %c0_15] : memref<16x64xf32, #tpu.memory_space<vmem>>, vector<16x64xf32>
    %10 = arith.addf %0, %1 : vector<16x32xf32>
    %11 = tpu.concatenate %10, %0 in 1 : vector<16x32xf32>, vector<16x32xf32> -> vector<16x64xf32>
    %cst = arith.constant dense<0.000000e+00> : vector<16x96xf32>
    %12 = tpu.matmul %11, %2, %cst {dimension_numbers = #tpu.dot_dimension_numbers<[1], [0], [0], [1], [0, 0, 1, 1], [], []>} : vector<16x64xf32>, vector<64x96xf32>, vector<16x96xf32> -> vector<16x96xf32>
    %13 = vector.broadcast %4 : vector<1x96xf32> to vector<16x96xf32>
    %14 = arith.addf %12, %13 : vector<16x96xf32>
    %15 = vector.extract_strided_slice %14 {offsets = [0, 0], sizes = [16, 32], strides = [1, 1]} : vector<16x96xf32> to vector<16x32xf32>
    %16 = vector.extract_strided_slice %14 {offsets = [0, 32], sizes = [16, 32], strides = [1, 1]} : vector<16x96xf32> to vector<16x32xf32>
    %17 = vector.extract_strided_slice %14 {offsets = [0, 64], sizes = [16, 32], strides = [1, 1]} : vector<16x96xf32> to vector<16x32xf32>
    %18 = tpu.concatenate %16, %16, %16, %16 in 0 : vector<16x32xf32>, vector<16x32xf32>, vector<16x32xf32>, vector<16x32xf32> -> vector<64x32xf32>
    %19 = arith.mulf %18, %8 : vector<64x32xf32>
    %cst_16 = arith.constant 0.353553385 : f32
    %20 = vector.broadcast %cst_16 : f32 to vector<16x32xf32>
    %21 = arith.mulf %15, %20 : vector<16x32xf32>
    %cst_17 = arith.constant dense<0.000000e+00> : vector<16x64xf32>
    %22 = tpu.matmul %21, %19, %cst_17 {dimension_numbers = #tpu.dot_dimension_numbers<[1], [1], [0], [0], [0, 0, 1, 0], [], []>} : vector<16x32xf32>, vector<64x32xf32>, vector<16x64xf32> -> vector<16x64xf32>
    %23 = arith.addf %22, %9 : vector<16x64xf32>
    %cst_18 = arith.constant dense<0xFF800000> : vector<16xf32>
    %24 = vector.multi_reduction <maximumf>, %23, %cst_18 [1] : vector<16x64xf32> to vector<16xf32>
    %25 = vector.shape_cast %24 : vector<16xf32> to vector<16x1xf32>
    %26 = vector.broadcast %25 : vector<16x1xf32> to vector<16x64xf32>
    %27 = arith.subf %23, %26 : vector<16x64xf32>
    %28 = math.exp %27 : vector<16x64xf32>
    %29 = tpu.concatenate %17, %17, %17, %17 in 0 : vector<16x32xf32>, vector<16x32xf32>, vector<16x32xf32>, vector<16x32xf32> -> vector<64x32xf32>
    %30 = arith.mulf %29, %8 : vector<64x32xf32>
    %31 = tpu.concatenate %30, %8 in 1 : vector<64x32xf32>, vector<64x32xf32> -> vector<64x64xf32>
    %cst_19 = arith.constant dense<0.000000e+00> : vector<16x64xf32>
    %32 = tpu.matmul %28, %31, %cst_19 {dimension_numbers = #tpu.dot_dimension_numbers<[1], [0], [0], [1], [0, 0, 1, 1], [], []>} : vector<16x64xf32>, vector<64x64xf32>, vector<16x64xf32> -> vector<16x64xf32>
    %33 = vector.extract_strided_slice %32 {offsets = [0, 0], sizes = [16, 32], strides = [1, 1]} : vector<16x64xf32> to vector<16x32xf32>
    %34 = vector.extract_strided_slice %32 {offsets = [0, 32], sizes = [16, 32], strides = [1, 1]} : vector<16x64xf32> to vector<16x32xf32>
    %35 = tpu.reciprocal %34 : vector<16x32xf32> -> vector<16x32xf32>
    %36 = arith.mulf %33, %35 : vector<16x32xf32>
    %cst_20 = arith.constant dense<0.000000e+00> : vector<16x32xf32>
    %37 = tpu.matmul %36, %3, %cst_20 {dimension_numbers = #tpu.dot_dimension_numbers<[1], [0], [0], [1], [0, 0, 1, 1], [], []>} : vector<16x32xf32>, vector<32x32xf32>, vector<16x32xf32> -> vector<16x32xf32>
    %38 = vector.broadcast %5 : vector<1x32xf32> to vector<16x32xf32>
    %39 = arith.addf %37, %38 : vector<16x32xf32>
    %40 = arith.addf %39, %0 : vector<16x32xf32>
    %cst_21 = arith.constant dense<0.000000e+00> : vector<16xf32>
    %41 = vector.multi_reduction <add>, %40, %cst_21 [1] : vector<16x32xf32> to vector<16xf32>
    %42 = vector.shape_cast %41 : vector<16xf32> to vector<16x1xf32>
    %cst_22 = arith.constant 3.200000e+01 : f32
    %43 = vector.broadcast %cst_22 : f32 to vector<16x1xf32>
    %44 = arith.divf %42, %43 : vector<16x1xf32>
    %45 = vector.broadcast %44 : vector<16x1xf32> to vector<16x32xf32>
    %46 = arith.subf %40, %45 : vector<16x32xf32>
    %47 = arith.mulf %46, %46 : vector<16x32xf32>
    %cst_23 = arith.constant dense<0.000000e+00> : vector<16xf32>
    %48 = vector.multi_reduction <add>, %47, %cst_23 [1] : vector<16x32xf32> to vector<16xf32>
    %49 = vector.shape_cast %48 : vector<16xf32> to vector<16x1xf32>
    %cst_24 = arith.constant 3.200000e+01 : f32
    %50 = vector.broadcast %cst_24 : f32 to vector<16x1xf32>
    %51 = arith.divf %49, %50 : vector<16x1xf32>
    %cst_25 = arith.constant 9.99999974E-6 : f32
    %52 = vector.broadcast %cst_25 : f32 to vector<16x1xf32>
    %53 = arith.addf %51, %52 : vector<16x1xf32>
    %54 = math.rsqrt %53 : vector<16x1xf32>
    %55 = vector.broadcast %54 : vector<16x1xf32> to vector<16x32xf32>
    %56 = arith.mulf %46, %55 : vector<16x32xf32>
    %57 = vector.broadcast %6 : vector<1x32xf32> to vector<16x32xf32>
    %58 = arith.mulf %56, %57 : vector<16x32xf32>
    %59 = vector.broadcast %7 : vector<1x32xf32> to vector<16x32xf32>
    %60 = arith.addf %58, %59 : vector<16x32xf32>
    %c0_26 = arith.constant 0 : index
    %c0_27 = arith.constant 0 : index
    %61 = vector.load %arg7[%c0_26, %c0_27] : memref<16x32xf32, #tpu.memory_space<vmem>>, vector<16x32xf32>
    tpu.vector_store %arg7[%c0_26, %c0_27], %60 {strides = array<i32>} : memref<16x32xf32, #tpu.memory_space<vmem>>, vector<16x32xf32>,
    return
  }
}

</mosaic_0001>

<llo_original>
// kernel: self_attention_layer.1
$region0: #{self_attention_layer.1}
  #allocation0 [shape = 'u32[]', space=smem, size = 0x4, offset = 0x4, fixed_abs, tag = 'smem constant byte address 0x4 - core index']
  #allocation1 [shape = 'u32[144,128]{1,0:T(1,128)}', space=vmem, size = 0x12000, scoped, tag = 'internal scratch']
  %s0 = inlined_call_operand.hbm [shape: f32[16,32], index: 0, kind: input, shape index: {}]
  %s1 = inlined_call_operand.hbm [shape: f32[16,32], index: 1, kind: input, shape index: {}]
  %s2 = inlined_call_operand.vmem [shape: f32[64,96], index: 2, kind: input, shape index: {}]
  %s3 = inlined_call_operand.vmem [shape: f32[32,32], index: 3, kind: input, shape index: {}]
  %s4 = inlined_call_operand.vmem [shape: f32[2,96], index: 4, kind: input, shape index: {}]
  %s5 = inlined_call_operand.vmem [shape: f32[64,32], index: 5, kind: input, shape index: {}]
  %s6 = inlined_call_operand.hbm [shape: f32[16,64], index: 6, kind: input, shape index: {}]
  %s7 = inlined_call_operand.hbm [shape: f32[16,32], index: 7, kind: output, shape index: {}]
  %s8 = sld [smem:[#allocation0]]
  $region50: #{self_attention_layer.1} parent=0
    _
  %s10 = ssub.s32 1, %s8
  %s11 = scalar_select 0, %s10, %s8
  $region1: #{self_attention_layer.1} parent=0
    #allocation2 [shape = 'u8[8192]{0}', space=vmem, size = 0x2000, scoped, tag = 'input window, operand 0, single buffered']
    #allocation3 [shape = 's32[1]{0}', space=sflag, size = 0x4, scoped, tag = 'scoped memory for self_attention_layer.1']
    #allocation4 [shape = 's32[1]{0}', space=sflag, size = 0x4, scoped, tag = 'scoped memory for self_attention_layer.1']
    #allocation5 [shape = 'u8[8192]{0}', space=vmem, size = 0x2000, scoped, tag = 'input window, operand 1, single buffered']
    #allocation6 [shape = 's32[1]{0}', space=sflag, size = 0x4, scoped, tag = 'scoped memory for self_attention_layer.1']
    #allocation7 [shape = 'u8[8192]{0}', space=vmem, size = 0x2000, scoped, tag = 'input window, operand 6, single buffered']
    #allocation8 [shape = 'u8[8192]{0}', space=vmem, size = 0x2000, scoped, tag = 'output window, operand 0, single buffered']
    %12 = vsyncpa [#allocation3], 0
    %13 = vsyncpa [#allocation6], 0
    %14 = vsyncpa [#allocation4], 0
    // Predicated region
    $region2: #{self_attention_layer.1} parent=1 // pred_check
      _
    $region3: #{self_attention_layer.1} parent=1 // pred_check_branch
      %16 = sbr.rel (0) target = $region5
    $region4: #{self_attention_layer.1} parent=1 // pred_region
      %s18 = ssub.s32 256, 256
      %19 = vsyncadd [#allocation3], %s18
      %s20 = sshll.u32 [#allocation2], 4
      %s21 = int_to_ptr.vmem [resolvable:$true] %s20
      %26 = dma.hbm_to_vmem [thread:$0]  %s0, 256, %s21, [#allocation3], 128, 128, 8
    $region5: #{self_attention_layer.1} parent=1 // pred_fallthru
      _
    // Predicated region
    $region6: #{self_attention_layer.1} parent=1 // pred_check
      _
    $region7: #{self_attention_layer.1} parent=1 // pred_check_branch
      %28 = sbr.rel (0) target = $region9
    $region8: #{self_attention_layer.1} parent=1 // pred_region
      %s30 = ssub.s32 256, 256
      %31 = vsyncadd [#allocation6], %s30
      %s32 = sshll.u32 [#allocation5], 4
      %s33 = int_to_ptr.vmem [resolvable:$true] %s32
      %38 = dma.hbm_to_vmem [thread:$0]  %s1, 256, %s33, [#allocation6], 128, 128, 8
    $region9: #{self_attention_layer.1} parent=1 // pred_fallthru
      _
    // Predicated region
    $region10: #{self_attention_layer.1} parent=1 // pred_check
      _
    $region11: #{self_attention_layer.1} parent=1 // pred_check_branch
      %40 = sbr.rel (0) target = $region13
    $region12: #{self_attention_layer.1} parent=1 // pred_region
      _
    $region13: #{self_attention_layer.1} parent=1 // pred_fallthru
      _
    // Predicated region
    $region14: #{self_attention_layer.1} parent=1 // pred_check
      _
    $region15: #{self_attention_layer.1} parent=1 // pred_check_branch
      %42 = sbr.rel (0) target = $region17
    $region16: #{self_attention_layer.1} parent=1 // pred_region
      _
    $region17: #{self_attention_layer.1} parent=1 // pred_fallthru
      _
    // Predicated region
    $region18: #{self_attention_layer.1} parent=1 // pred_check
      _
    $region19: #{self_attention_layer.1} parent=1 // pred_check_branch
      %44 = sbr.rel (0) target = $region21
    $region20: #{self_attention_layer.1} parent=1 // pred_region
      _
    $region21: #{self_attention_layer.1} parent=1 // pred_fallthru
      _
    // Predicated region
    $region22: #{self_attention_layer.1} parent=1 // pred_check
      _
    $region23: #{self_attention_layer.1} parent=1 // pred_check_branch
      %46 = sbr.rel (0) target = $region25
    $region24: #{self_attention_layer.1} parent=1 // pred_region
      _
    $region25: #{self_attention_layer.1} parent=1 // pred_fallthru
      _
    // Predicated region
    $region26: #{self_attention_layer.1} parent=1 // pred_check
      _
    $region27: #{self_attention_layer.1} parent=1 // pred_check_branch
      %48 = sbr.rel (0) target = $region29
    $region28: #{self_attention_layer.1} parent=1 // pred_region
      %s50 = ssub.s32 256, 256
      %51 = vsyncadd [#allocation6], %s50
      %s52 = sshll.u32 [#allocation7], 4
      %s53 = int_to_ptr.vmem [resolvable:$true] %s52
      %58 = dma.hbm_to_vmem [thread:$0]  %s6, 256, %s53, [#allocation6], 128, 128, 8
    $region29: #{self_attention_layer.1} parent=1 // pred_fallthru
      _
    // Predicated region
    $region30: #{self_attention_layer.1} parent=1 // pred_check
      _
    $region31: #{self_attention_layer.1} parent=1 // pred_check_branch
      %60 = sbr.rel (0) target = $region33
    $region32: #{self_attention_layer.1} parent=1 // pred_region
      %61 = dma.done [#allocation3], 256
    $region33: #{self_attention_layer.1} parent=1 // pred_fallthru
      _
    // Predicated region
    $region34: #{self_attention_layer.1} parent=1 // pred_check
      _
    $region35: #{self_attention_layer.1} parent=1 // pred_check_branch
      %63 = sbr.rel (0) target = $region37
    $region36: #{self_attention_layer.1} parent=1 // pred_region
      %64 = dma.done [#allocation6], 256
    $region37: #{self_attention_layer.1} parent=1 // pred_fallthru
      _
    // Predicated region
    $region38: #{self_attention_layer.1} parent=1 // pred_check
      _
    $region39: #{self_attention_layer.1} parent=1 // pred_check_branch
      %66 = sbr.rel (0) target = $region41
    $region40: #{self_attention_layer.1} parent=1 // pred_region
      %67 = dma.done [#allocation6], 256
    $region41: #{self_attention_layer.1} parent=1 // pred_fallthru
      _
    %v68 = vld [vmem:[#allocation2] sm:$0xff]
    %v69 = vld [vmem:[#allocation2 + $0x8] sm:$0xff]
    %v70 = vld [vmem:[#allocation5] sm:$0xff]
    %v71 = vld [vmem:[#allocation5 + $0x8] sm:$0xff]
    %v72 = vld [vmem:[%s2] sm:$0xff]
    %v73 = vld [vmem:[%s2 + $0x8] sm:$0xff]
    %v74 = vld [vmem:[%s2 + $0x10] sm:$0xff]
    %v75 = vld [vmem:[%s2 + $0x18] sm:$0xff]
    %v76 = vld [vmem:[%s2 + $0x20] sm:$0xff]
    %v77 = vld [vmem:[%s2 + $0x28] sm:$0xff]
    %v78 = vld [vmem:[%s2 + $0x30] sm:$0xff]
    %v79 = vld [vmem:[%s2 + $0x38] sm:$0xff]
    %v80 = vld [vmem:[%s3] sm:$0xff]
    %v81 = vld [vmem:[%s3 + $0x8] sm:$0xff]
    %v82 = vld [vmem:[%s3 + $0x10] sm:$0xff]
    %v83 = vld [vmem:[%s3 + $0x18] sm:$0xff]
    %v84 = vld [vmem:[%s4] sm:$0x1]
    %v85 = vld [vmem:[%s4 + $0x1] sm:$0x1]
    %v86 = vld [vmem:[%s5] sm:$0xff]
    %v87 = vld [vmem:[%s5 + $0x8] sm:$0xff]
    %v88 = vld [vmem:[%s5 + $0x10] sm:$0xff]
    %v89 = vld [vmem:[%s5 + $0x18] sm:$0xff]
    %v90 = vld [vmem:[%s5 + $0x20] sm:$0xff]
    %v91 = vld [vmem:[%s5 + $0x28] sm:$0xff]
    %v92 = vld [vmem:[%s5 + $0x30] sm:$0xff]
    %v93 = vld [vmem:[%s5 + $0x38] sm:$0xff]
    %v94 = vld [vmem:[#allocation7] sm:$0xff]
    %v95 = vld [vmem:[#allocation7 + $0x8] sm:$0xff]
    %v96 = vadd.f32 %v68, %v70
    %v97 = vadd.f32 %v69, %v71
    %100 = vrot.lane.b32.xlu0 %v68, 32
    %v101 = vpop.permute.xlu0 %100
    %102 = vrot.lane.b32.xlu0 %v69, 32
    %v103 = vpop.permute.xlu0 %102
    %vm106 = vcmask 261120
    %v107 = vsel %vm106, %v96, %v101
    %v108 = vsel %vm106, %v97, %v103
    %v109 = vlaneseq
    %v110 = vshrl.u32 %v109, 7
    %v111 = vsub.s32 0, %v110
    %v112 = vrot.slane %v84, %v111
    %vm113 = vcmask 523264
    %v115 = vsel %vm113, %v107, 0
    %v118 = vsel %vm113, %v108, 0
    %120 = vmatprep.subr.mxu0 0.0
    %121 = vmatpush1.msra.mxu0 0.0
    %122 = vmatprep.subr.mxu0 0.0
    %123 = vmatpush1.msra.mxu0 0.0
    %124 = vmatprep.subr.mxu0 0.0
    %125 = vmatpush1.msra.mxu0 0.0
    %126 = vmatprep.subr.mxu0 0.0
    %127 = vmatpush1.msra.mxu0 0.0
    %128 = vmatprep.subr.mxu0 0.0
    %129 = vmatpush1.msra.mxu0 0.0
    %130 = vmatprep.subr.mxu0 0.0
    %131 = vmatpush1.msra.mxu0 0.0
    %132 = vmatprep.subr.mxu0 0.0
    %133 = vmatpush1.msra.mxu0 0.0
    %134 = vmatprep.subr.mxu0 0.0
    %135 = vmatpush1.msra.mxu0 0.0
    %136 = vmatprep.subr.mxu0 0.0
    %137 = vmatpush1.msra.mxu0 %v79
    %138 = vmatprep.subr.mxu0 0.0
    %139 = vmatpush1.msra.mxu0 %v78
    %140 = vmatprep.subr.mxu0 0.0
    %141 = vmatpush1.msra.mxu0 %v77
    %142 = vmatprep.subr.mxu0 0.0
    %143 = vmatpush1.msra.mxu0 %v76
    %144 = vmatprep.subr.mxu0 0.0
    %145 = vmatpush1.msra.mxu0 %v75
    %146 = vmatprep.subr.mxu0 0.0
    %147 = vmatpush1.msra.mxu0 %v74
    %148 = vmatprep.subr.mxu0 0.0
    %149 = vmatpush1.msra.mxu0 %v73
    %150 = vmatprep.subr.mxu0 0.0
    %151 = vmatpush1.msra.mxu0 %v72
    %152 = vmatprep.subr.mxu0 0.0
    %153 = vmatpush2.msra.mxu0 0.0
    %154 = vmatprep.subr.mxu0 0.0
    %155 = vmatpush2.msra.mxu0 0.0
    %156 = vmatprep.subr.mxu0 0.0
    %157 = vmatpush2.msra.mxu0 0.0
    %158 = vmatprep.subr.mxu0 0.0
    %159 = vmatpush2.msra.mxu0 0.0
    %160 = vmatprep.subr.mxu0 0.0
    %161 = vmatpush2.msra.mxu0 0.0
    %162 = vmatprep.subr.mxu0 0.0
    %163 = vmatpush2.msra.mxu0 0.0
    %164 = vmatprep.subr.mxu0 0.0
    %165 = vmatpush2.msra.mxu0 0.0
    %166 = vmatprep.subr.mxu0 0.0
    %167 = vmatpush2.msra.mxu0 0.0
    %168 = vmatprep.subr.mxu0 0.0
    %169 = vmatpush2.msra.mxu0 0.0
    %170 = vmatprep.subr.mxu0 0.0
    %171 = vmatpush2.msra.mxu0 0.0
    %172 = vmatprep.subr.mxu0 0.0
    %173 = vmatpush2.msra.mxu0 0.0
    %174 = vmatprep.subr.mxu0 0.0
    %175 = vmatpush2.msra.mxu0 0.0
    %176 = vmatprep.subr.mxu0 0.0
    %177 = vmatpush2.msra.mxu0 0.0
    %178 = vmatprep.subr.mxu0 0.0
    %179 = vmatpush2.msra.mxu0 0.0
    %180 = vmatprep.subr.mxu0 0.0
    %181 = vmatpush2.msra.mxu0 0.0
    %182 = vmatprep.subr.mxu0 0.0
    %183 = vmatpush2.msra.mxu0 0.0
    %184 = vmatprep.mubr.f32.mxu0 0.0
    %185 = vmatmul.mubr.f32.gmra.mxu0 %v115
    %v186 = vpop.f32.mrf.mxu0
    %v187 = vadd.f32 %v112, %v186
    %v188 = vpop.f32.mrf.mxu0
    %189 = vmatprep.mubr.f32.mxu0 0.0
    %190 = vmatmul.mubr.f32.gmra.mxu0 %v118
    %v191 = vpop.f32.mrf.mxu0
    %v192 = vadd.f32 %v112, %v191
    %v193 = vpop.f32.mrf.mxu0
    %194 = vdwg.mxu0
    %203 = vrot.lane.b32.xlu0 %v86, 32
    %v204 = vpop.permute.xlu0 %203
    %205 = vrot.lane.b32.xlu0 %v87, 32
    %v206 = vpop.permute.xlu0 %205
    %207 = vrot.lane.b32.xlu0 %v88, 32
    %v208 = vpop.permute.xlu0 %207
    %209 = vrot.lane.b32.xlu0 %v89, 32
    %v210 = vpop.permute.xlu0 %209
    %211 = vrot.lane.b32.xlu0 %v90, 32
    %v212 = vpop.permute.xlu0 %211
    %213 = vrot.lane.b32.xlu0 %v91, 32
    %v214 = vpop.permute.xlu0 %213
    %215 = vrot.lane.b32.xlu0 %v92, 32
    %v216 = vpop.permute.xlu0 %215
    %217 = vrot.lane.b32.xlu0 %v93, 32
    %v218 = vpop.permute.xlu0 %217
    %v227 = vmul.f32 %v187, %v204
    %v228 = vmul.f32 %v192, %v206
    %v229 = vmul.f32 %v187, %v208
    %v230 = vmul.f32 %v192, %v210
    %v231 = vmul.f32 %v187, %v212
    %v232 = vmul.f32 %v192, %v214
    %v233 = vmul.f32 %v187, %v216
    %v234 = vmul.f32 %v192, %v218
    %v235 = vmul.f32 %v187, 0.35355338
    %v236 = vmul.f32 %v192, 0.35355338
    %245 = vrot.lane.b32.xlu0 %v227, 96
    %v246 = vpop.permute.xlu0 %245
    %247 = vrot.lane.b32.xlu0 %v228, 96
    %v248 = vpop.permute.xlu0 %247
    %249 = vrot.lane.b32.xlu0 %v229, 96
    %v250 = vpop.permute.xlu0 %249
    %251 = vrot.lane.b32.xlu0 %v230, 96
    %v252 = vpop.permute.xlu0 %251
    %253 = vrot.lane.b32.xlu0 %v231, 96
    %v254 = vpop.permute.xlu0 %253
    %255 = vrot.lane.b32.xlu0 %v232, 96
    %v256 = vpop.permute.xlu0 %255
    %257 = vrot.lane.b32.xlu0 %v233, 96
    %v258 = vpop.permute.xlu0 %257
    %259 = vrot.lane.b32.xlu0 %v234, 96
    %v260 = vpop.permute.xlu0 %259
    %v262 = vsel %vm106, %v235, 0
    %v265 = vsel %vm106, %v236, 0
    %v267 = vsel %vm106, %v246, 0
    %v269 = vsel %vm106, %v248, 0
    %v271 = vsel %vm106, %v250, 0
    %v273 = vsel %vm106, %v252, 0
    %v275 = vsel %vm106, %v254, 0
    %v277 = vsel %vm106, %v256, 0
    %v279 = vsel %vm106, %v258, 0
    %v281 = vsel %vm106, %v260, 0
    %283 = vmatprep.subr.mxu0 0.0
    %284 = vmatpush1.xpose.msra.mxu0 0.0
    %285 = vmatprep.subr.mxu0 0.0
    %286 = vmatpush1.xpose.msra.mxu0 0.0
    %287 = vmatprep.subr.mxu0 0.0
    %288 = vmatpush1.xpose.msra.mxu0 0.0
    %289 = vmatprep.subr.mxu0 0.0
    %290 = vmatpush1.xpose.msra.mxu0 0.0
    %291 = vmatprep.subr.mxu0 0.0
    %292 = vmatpush1.xpose.msra.mxu0 0.0
    %293 = vmatprep.subr.mxu0 0.0
    %294 = vmatpush1.xpose.msra.mxu0 0.0
    %295 = vmatprep.subr.mxu0 0.0
    %296 = vmatpush1.xpose.msra.mxu0 0.0
    %297 = vmatprep.subr.mxu0 0.0
    %298 = vmatpush1.xpose.msra.mxu0 0.0
    %299 = vmatprep.subr.mxu0 0.0
    %300 = vmatpush1.xpose.msra.mxu0 %v281
    %301 = vmatprep.subr.mxu0 0.0
    %302 = vmatpush1.xpose.msra.mxu0 %v279
    %303 = vmatprep.subr.mxu0 0.0
    %304 = vmatpush1.xpose.msra.mxu0 %v277
    %305 = vmatprep.subr.mxu0 0.0
    %306 = vmatpush1.xpose.msra.mxu0 %v275
    %307 = vmatprep.subr.mxu0 0.0
    %308 = vmatpush1.xpose.msra.mxu0 %v273
    %309 = vmatprep.subr.mxu0 0.0
    %310 = vmatpush1.xpose.msra.mxu0 %v271
    %311 = vmatprep.subr.mxu0 0.0
    %312 = vmatpush1.xpose.msra.mxu0 %v269
    %313 = vmatprep.subr.mxu0 0.0
    %314 = vmatpush1.xpose.msra.mxu0 %v267
    %315 = vmatprep.subr.mxu0 0.0
    %316 = vmatpush2.xpose.msra.mxu0 0.0
    %317 = vmatprep.subr.mxu0 0.0
    %318 = vmatpush2.xpose.msra.mxu0 0.0
    %319 = vmatprep.subr.mxu0 0.0
    %320 = vmatpush2.xpose.msra.mxu0 0.0
    %321 = vmatprep.subr.mxu0 0.0
    %322 = vmatpush2.xpose.msra.mxu0 0.0
    %323 = vmatprep.subr.mxu0 0.0
    %324 = vmatpush2.xpose.msra.mxu0 0.0
    %325 = vmatprep.subr.mxu0 0.0
    %326 = vmatpush2.xpose.msra.mxu0 0.0
    %327 = vmatprep.subr.mxu0 0.0
    %328 = vmatpush2.xpose.msra.mxu0 0.0
    %329 = vmatprep.subr.mxu0 0.0
    %330 = vmatpush2.xpose.msra.mxu0 0.0
    %331 = vmatprep.subr.mxu0 0.0
    %332 = vmatpush2.xpose.msra.mxu0 0.0
    %333 = vmatprep.subr.mxu0 0.0
    %334 = vmatpush2.xpose.msra.mxu0 0.0
    %335 = vmatprep.subr.mxu0 0.0
    %336 = vmatpush2.xpose.msra.mxu0 0.0
    %337 = vmatprep.subr.mxu0 0.0
    %338 = vmatpush2.xpose.msra.mxu0 0.0
    %339 = vmatprep.subr.mxu0 0.0
    %340 = vmatpush2.xpose.msra.mxu0 0.0
    %341 = vmatprep.subr.mxu0 0.0
    %342 = vmatpush2.xpose.msra.mxu0 0.0
    %343 = vmatprep.subr.mxu0 0.0
    %344 = vmatpush2.xpose.msra.mxu0 0.0
    %345 = vmatprep.subr.mxu0 0.0
    %346 = vmatpush2.xpose.msra.mxu0 0.0
    %347 = vmatprep.mubr.f32.mxu0 0.0
    %348 = vmatmul.mubr.f32.gmra.mxu0 %v262
    %v349 = vpop.f32.mrf.mxu0
    %v350 = vadd.f32 %v94, %v349
    %v351 = vpop.f32.mrf.mxu0
    %352 = vmatprep.mubr.f32.mxu0 0.0
    %353 = vmatmul.mubr.f32.gmra.mxu0 %v265
    %v354 = vpop.f32.mrf.mxu0
    %v355 = vadd.f32 %v95, %v354
    %v356 = vpop.f32.mrf.mxu0
    %357 = vdwg.mxu0
    %v358 = vsel %vm113, %v350, -inf
    %359 = vmax.xlane.f32.xlu0 %v358
    %v360 = vpop.xlane.xlu0 %359
    %v361 = vsel %vm113, %v355, -inf
    %362 = vmax.xlane.f32.xlu0 %v361
    %v363 = vpop.xlane.xlu0 %362
    %v364 = vsub.f32 %v350, %v360
    %v365 = vsub.f32 %v355, %v363
    %v366 = vmul.f32 %v364, 1.442695
    %v367 = vpow.pop %v366
    %v368 = vmul.f32 %v365, 1.442695
    %v369 = vpow.pop %v368
    %370 = vrot.lane.b32.xlu0 %v86, 64
    %v371 = vpop.permute.xlu0 %370
    %372 = vrot.lane.b32.xlu0 %v87, 64
    %v373 = vpop.permute.xlu0 %372
    %374 = vrot.lane.b32.xlu0 %v88, 64
    %v375 = vpop.permute.xlu0 %374
    %376 = vrot.lane.b32.xlu0 %v89, 64
    %v377 = vpop.permute.xlu0 %376
    %378 = vrot.lane.b32.xlu0 %v90, 64
    %v379 = vpop.permute.xlu0 %378
    %380 = vrot.lane.b32.xlu0 %v91, 64
    %v381 = vpop.permute.xlu0 %380
    %382 = vrot.lane.b32.xlu0 %v92, 64
    %v383 = vpop.permute.xlu0 %382
    %384 = vrot.lane.b32.xlu0 %v93, 64
    %v385 = vpop.permute.xlu0 %384
    %v394 = vmul.f32 %v187, %v371
    %v395 = vmul.f32 %v192, %v373
    %v396 = vmul.f32 %v187, %v375
    %v397 = vmul.f32 %v192, %v377
    %v398 = vmul.f32 %v187, %v379
    %v399 = vmul.f32 %v192, %v381
    %v400 = vmul.f32 %v187, %v383
    %v401 = vmul.f32 %v192, %v385
    %410 = vrot.lane.b32.xlu0 %v394, 64
    %v411 = vpop.permute.xlu0 %410
    %412 = vrot.lane.b32.xlu0 %v395, 64
    %v413 = vpop.permute.xlu0 %412
    %414 = vrot.lane.b32.xlu0 %v396, 64
    %v415 = vpop.permute.xlu0 %414
    %416 = vrot.lane.b32.xlu0 %v397, 64
    %v417 = vpop.permute.xlu0 %416
    %418 = vrot.lane.b32.xlu0 %v398, 64
    %v419 = vpop.permute.xlu0 %418
    %420 = vrot.lane.b32.xlu0 %v399, 64
    %v421 = vpop.permute.xlu0 %420
    %422 = vrot.lane.b32.xlu0 %v400, 64
    %v423 = vpop.permute.xlu0 %422
    %424 = vrot.lane.b32.xlu0 %v401, 64
    %v425 = vpop.permute.xlu0 %424
    %v434 = vsel %vm106, %v411, %v204
    %v435 = vsel %vm106, %v413, %v206
    %v436 = vsel %vm106, %v415, %v208
    %v437 = vsel %vm106, %v417, %v210
    %v438 = vsel %vm106, %v419, %v212
    %v439 = vsel %vm106, %v421, %v214
    %v440 = vsel %vm106, %v423, %v216
    %v441 = vsel %vm106, %v425, %v218
    %v443 = vsel %vm113, %v367, 0
    %v446 = vsel %vm113, %v369, 0
    %448 = vmatprep.subr.mxu0 0.0
    %449 = vmatpush1.msra.mxu0 0.0
    %450 = vmatprep.subr.mxu0 0.0
    %451 = vmatpush1.msra.mxu0 0.0
    %452 = vmatprep.subr.mxu0 0.0
    %453 = vmatpush1.msra.mxu0 0.0
    %454 = vmatprep.subr.mxu0 0.0
    %455 = vmatpush1.msra.mxu0 0.0
    %456 = vmatprep.subr.mxu0 0.0
    %457 = vmatpush1.msra.mxu0 0.0
    %458 = vmatprep.subr.mxu0 0.0
    %459 = vmatpush1.msra.mxu0 0.0
    %460 = vmatprep.subr.mxu0 0.0
    %461 = vmatpush1.msra.mxu0 0.0
    %462 = vmatprep.subr.mxu0 0.0
    %463 = vmatpush1.msra.mxu0 0.0
    %464 = vmatprep.subr.mxu0 0.0
    %465 = vmatpush1.msra.mxu0 %v441
    %466 = vmatprep.subr.mxu0 0.0
    %467 = vmatpush1.msra.mxu0 %v440
    %468 = vmatprep.subr.mxu0 0.0
    %469 = vmatpush1.msra.mxu0 %v439
    %470 = vmatprep.subr.mxu0 0.0
    %471 = vmatpush1.msra.mxu0 %v438
    %472 = vmatprep.subr.mxu0 0.0
    %473 = vmatpush1.msra.mxu0 %v437
    %474 = vmatprep.subr.mxu0 0.0
    %475 = vmatpush1.msra.mxu0 %v436
    %476 = vmatprep.subr.mxu0 0.0
    %477 = vmatpush1.msra.mxu0 %v435
    %478 = vmatprep.subr.mxu0 0.0
    %479 = vmatpush1.msra.mxu0 %v434
    %480 = vmatprep.subr.mxu0 0.0
    %481 = vmatpush2.msra.mxu0 0.0
    %482 = vmatprep.subr.mxu0 0.0
    %483 = vmatpush2.msra.mxu0 0.0
    %484 = vmatprep.subr.mxu0 0.0
    %485 = vmatpush2.msra.mxu0 0.0
    %486 = vmatprep.subr.mxu0 0.0
    %487 = vmatpush2.msra.mxu0 0.0
    %488 = vmatprep.subr.mxu0 0.0
    %489 = vmatpush2.msra.mxu0 0.0
    %490 = vmatprep.subr.mxu0 0.0
    %491 = vmatpush2.msra.mxu0 0.0
    %492 = vmatprep.subr.mxu0 0.0
    %493 = vmatpush2.msra.mxu0 0.0
    %494 = vmatprep.subr.mxu0 0.0
    %495 = vmatpush2.msra.mxu0 0.0
    %496 = vmatprep.subr.mxu0 0.0
    %497 = vmatpush2.msra.mxu0 0.0
    %498 = vmatprep.subr.mxu0 0.0
    %499 = vmatpush2.msra.mxu0 0.0
    %500 = vmatprep.subr.mxu0 0.0
    %501 = vmatpush2.msra.mxu0 0.0
    %502 = vmatprep.subr.mxu0 0.0
    %503 = vmatpush2.msra.mxu0 0.0
    %504 = vmatprep.subr.mxu0 0.0
    %505 = vmatpush2.msra.mxu0 0.0
    %506 = vmatprep.subr.mxu0 0.0
    %507 = vmatpush2.msra.mxu0 0.0
    %508 = vmatprep.subr.mxu0 0.0
    %509 = vmatpush2.msra.mxu0 0.0
    %510 = vmatprep.subr.mxu0 0.0
    %511 = vmatpush2.msra.mxu0 0.0
    %512 = vmatprep.mubr.f32.mxu0 0.0
    %513 = vmatmul.mubr.f32.gmra.mxu0 %v443
    %v514 = vpop.f32.mrf.mxu0
    %v515 = vadd.f32 0.0, %v514
    %v516 = vpop.f32.mrf.mxu0
    %517 = vmatprep.mubr.f32.mxu0 0.0
    %518 = vmatmul.mubr.f32.gmra.mxu0 %v446
    %v519 = vpop.f32.mrf.mxu0
    %v520 = vadd.f32 0.0, %v519
    %v521 = vpop.f32.mrf.mxu0
    %522 = vdwg.mxu0
    %v523 = vrcp.pop %v515
    %v524 = vrcp.pop %v520
    %527 = vrot.lane.b32.xlu0 %v523, 96
    %v528 = vpop.permute.xlu0 %527
    %529 = vrot.lane.b32.xlu0 %v524, 96
    %v530 = vpop.permute.xlu0 %529
    %v533 = vmul.f32 %v515, %v528
    %v534 = vmul.f32 %v520, %v530
    %v535 = vlaneseq
    %v536 = vshrl.u32 %v535, 7
    %v537 = vsub.s32 0, %v536
    %v538 = vrot.slane %v85, %v537
    %v540 = vsel %vm106, %v533, 0
    %v543 = vsel %vm106, %v534, 0
    %545 = vmatprep.subr.mxu0 0.0
    %546 = vmatpush1.msra.mxu0 0.0
    %547 = vmatprep.subr.mxu0 0.0
    %548 = vmatpush1.msra.mxu0 0.0
    %549 = vmatprep.subr.mxu0 0.0
    %550 = vmatpush1.msra.mxu0 0.0
    %551 = vmatprep.subr.mxu0 0.0
    %552 = vmatpush1.msra.mxu0 0.0
    %553 = vmatprep.subr.mxu0 0.0
    %554 = vmatpush1.msra.mxu0 0.0
    %555 = vmatprep.subr.mxu0 0.0
    %556 = vmatpush1.msra.mxu0 0.0
    %557 = vmatprep.subr.mxu0 0.0
    %558 = vmatpush1.msra.mxu0 0.0
    %559 = vmatprep.subr.mxu0 0.0
    %560 = vmatpush1.msra.mxu0 0.0
    %561 = vmatprep.subr.mxu0 0.0
    %562 = vmatpush1.msra.mxu0 0.0
    %563 = vmatprep.subr.mxu0 0.0
    %564 = vmatpush1.msra.mxu0 0.0
    %565 = vmatprep.subr.mxu0 0.0
    %566 = vmatpush1.msra.mxu0 0.0
    %567 = vmatprep.subr.mxu0 0.0
    %568 = vmatpush1.msra.mxu0 0.0
    %569 = vmatprep.subr.mxu0 0.0
    %570 = vmatpush1.msra.mxu0 %v83
    %571 = vmatprep.subr.mxu0 0.0
    %572 = vmatpush1.msra.mxu0 %v82
    %573 = vmatprep.subr.mxu0 0.0
    %574 = vmatpush1.msra.mxu0 %v81
    %575 = vmatprep.subr.mxu0 0.0
    %576 = vmatpush1.msra.mxu0 %v80
    %577 = vmatprep.subr.mxu0 0.0
    %578 = vmatpush2.msra.mxu0 0.0
    %579 = vmatprep.subr.mxu0 0.0
    %580 = vmatpush2.msra.mxu0 0.0
    %581 = vmatprep.subr.mxu0 0.0
    %582 = vmatpush2.msra.mxu0 0.0
    %583 = vmatprep.subr.mxu0 0.0
    %584 = vmatpush2.msra.mxu0 0.0
    %585 = vmatprep.subr.mxu0 0.0
    %586 = vmatpush2.msra.mxu0 0.0
    %587 = vmatprep.subr.mxu0 0.0
    %588 = vmatpush2.msra.mxu0 0.0
    %589 = vmatprep.subr.mxu0 0.0
    %590 = vmatpush2.msra.mxu0 0.0
    %591 = vmatprep.subr.mxu0 0.0
    %592 = vmatpush2.msra.mxu0 0.0
    %593 = vmatprep.subr.mxu0 0.0
    %594 = vmatpush2.msra.mxu0 0.0
    %595 = vmatprep.subr.mxu0 0.0
    %596 = vmatpush2.msra.mxu0 0.0
    %597 = vmatprep.subr.mxu0 0.0
    %598 = vmatpush2.msra.mxu0 0.0
    %599 = vmatprep.subr.mxu0 0.0
    %600 = vmatpush2.msra.mxu0 0.0
    %601 = vmatprep.subr.mxu0 0.0
    %602 = vmatpush2.msra.mxu0 0.0
    %603 = vmatprep.subr.mxu0 0.0
    %604 = vmatpush2.msra.mxu0 0.0
    %605 = vmatprep.subr.mxu0 0.0
    %606 = vmatpush2.msra.mxu0 0.0
    %607 = vmatprep.subr.mxu0 0.0
    %608 = vmatpush2.msra.mxu0 0.0
    %609 = vmatprep.mubr.f32.mxu0 0.0
    %610 = vmatmul.mubr.f32.gmra.mxu0 %v540
    %v611 = vpop.f32.mrf.mxu0
    %v612 = vadd.f32 %v538, %v611
    %v613 = vpop.f32.mrf.mxu0
    %614 = vmatprep.mubr.f32.mxu0 0.0
    %615 = vmatmul.mubr.f32.gmra.mxu0 %v543
    %v616 = vpop.f32.mrf.mxu0
    %v617 = vadd.f32 %v538, %v616
    %v618 = vpop.f32.mrf.mxu0
    %619 = vdwg.mxu0
    %v620 = vadd.f32 %v612, %v68
    %v621 = vadd.f32 %v617, %v69
    %v622 = vsel %vm106, %v620, 0.0
    %623 = vadd.xlane.f32.xlu0 %v622
    %v624 = vpop.xlane.xlu0 %623
    %v625 = vsel %vm106, %v621, 0.0
    %626 = vadd.xlane.f32.xlu0 %v625
    %v627 = vpop.xlane.xlu0 %626
    %v628 = vrcp.pop 32.0
    %v629 = vmul.f32 %v624, %v628
    %v630 = vmul.f32 %v627, %v628
    %v631 = vsub.f32 %v620, %v629
    %v632 = vsub.f32 %v621, %v630
    %v633 = vmul.f32 %v631, %v631
    %v634 = vmul.f32 %v632, %v632
    %v635 = vsel %vm106, %v633, 0.0
    %636 = vadd.xlane.f32.xlu0 %v635
    %v637 = vpop.xlane.xlu0 %636
    %v638 = vsel %vm106, %v634, 0.0
    %639 = vadd.xlane.f32.xlu0 %v638
    %v640 = vpop.xlane.xlu0 %639
    %v641 = vmul.f32 %v637, %v628
    %v642 = vmul.f32 %v640, %v628
    %v643 = vadd.f32 %v641, 1e-05
    %v644 = vadd.f32 %v642, 1e-05
    %v645 = vrsqrt.pop %v643
    %v646 = vrsqrt.pop %v644
    %v647 = vmul.f32 %v631, %v645
    %v648 = vmul.f32 %v632, %v646
    %650 = vrot.lane.b32.xlu0 %v538, 96
    %v651 = vpop.permute.xlu0 %650
    %v653 = vmul.f32 %v647, %v651
    %v654 = vmul.f32 %v648, %v651
    %655 = vrot.lane.b32.xlu0 %v538, 64
    %v656 = vpop.permute.xlu0 %655
    %v658 = vadd.f32 %v653, %v656
    %v659 = vadd.f32 %v654, %v656
    %660 = vst.msk [vmem:[#allocation8] sm:$0xff] %vm106, %v658
    %661 = vst.msk [vmem:[#allocation8 + $0x8] sm:$0xff] %vm106, %v659
    // Predicated region
    $region42: #{self_attention_layer.1} parent=1 // pred_check
      _
    $region43: #{self_attention_layer.1} parent=1 // pred_check_branch
      %663 = sbr.rel (0) target = $region45
    $region44: #{self_attention_layer.1} parent=1 // pred_region
      %s665 = ssub.s32 256, 256
      %666 = vsyncadd [#allocation4], %s665
      %s667 = sshll.u32 [#allocation8], 4
      %s668 = int_to_ptr.vmem [resolvable:$true] %s667
      %673 = dma.vmem_to_hbm [thread:$0]  %s668, 256, %s7, [#allocation4], 128, 128, 8
    $region45: #{self_attention_layer.1} parent=1 // pred_fallthru
      _
    // Predicated region
    $region46: #{self_attention_layer.1} parent=1 // pred_check
      _
    $region47: #{self_attention_layer.1} parent=1 // pred_check_branch
      %675 = sbr.rel (0) target = $region49
    $region48: #{self_attention_layer.1} parent=1 // pred_region
      %676 = dma.done [#allocation4], 256
    $region49: #{self_attention_layer.1} parent=1 // pred_fallthru
      _
    %677 = vsyncpa [#allocation3], 1
    %678 = vsyncpa [#allocation6], 1
    %679 = vsyncpa [#allocation4], 1

</llo_original>
